<compile_context>
chip_gen: v5e
topology: v5e:2x2
jax: 0.10.0
libtpu: 0.0.40
codegen_flags: <defaults>
</compile_context>

<pallas_src>
import functools

import jax
import jax.numpy as jnp
from jax import lax
from jax.experimental import pallas as pl
from jax.experimental.pallas import tpu as pltpu

LANE = 128
SUB = 8


def _round_up(n, m):
    return ((n + m - 1) // m) * m


def _gru_fc_kernel(x_ref,      # (T*tile_b, Dp)   f32  time-major rows for this batch tile
                   p_ref,      # (P_ROWS, Wcols)  f32  packed params (see wrapper)
                   out_ref,    # (tile_b, Op)     f32
                   gi_ref,     # (T*tile_b, W)    f32  VMEM scratch: precomputed input proj
                   *, T, tile_b, Dp, Hp, off_z, W_rz, W, Op, rows):
    R_WIH, R_WHH, R_WFC, R_BGI, R_BHN, R_BFC = rows

    # (1) One batched input projection for ALL timesteps.
    #     b_ih (all gates) + b_hh (r,z) folded in here, off the serial path.
    wih = p_ref[R_WIH:R_WIH + Dp, :W]                       # (Dp, W)
    b_gi = p_ref[R_BGI:R_BGI + 1, :W]                       # (1, W)
    gi_ref[...] = (jnp.dot(x_ref[...], wih,
                           preferred_element_type=jnp.float32) + b_gi)

    # (2) Only b_hn has to live inside the recurrence; hoist its broadcast once
    #     (a single (8,128) vreg held live — cheap).
    bhn = jnp.broadcast_to(p_ref[R_BHN:R_BHN + 1, :Hp], (tile_b, Hp))

    def step(t, h_prev):                                    # h_prev: (tile_b, Hp)
        row0 = pl.multiple_of(t * tile_b, tile_b)
        gi_t = gi_ref[pl.ds(row0, tile_b), :]               # (tile_b, W)

        # Re-read w_hh from VMEM each step instead of keeping it live in vregs
        # across the fully-unrolled loop (vld slots are idle here).
        gh = jnp.dot(h_prev, p_ref[R_WHH:R_WHH + Hp, :W],
                     preferred_element_type=jnp.float32)    # (tile_b, W)

        # Fused r|z sigmoid on a single (tile_b, W_rz) slab (1 vreg when 2H<=128).
        s = jax.nn.sigmoid(gi_t[:, :W_rz] + gh[:, :W_rz])

        # r occupies lanes [0:H) of the rz slab -> already aligned with the n slab.
        r = s if W_rz == Hp else s[:, :Hp]
        n = jnp.tanh(gi_t[:, W_rz:] + r * (gh[:, W_rz:] + bhn))

        # z: lane-aligned slice if its offset is a multiple of 128, else a lane
        # rotation (XLU) to bring it down to lanes [0:H).
        if off_z % LANE == 0:
            z = s[:, off_z:off_z + Hp]
        else:
            z = pltpu.roll(s, shift=W_rz - off_z, axis=1)
        # (1-z)*n + z*h == n + z*(h-n); padded lanes stay exactly 0.
        return n + z * (h_prev - n)

    h0 = jnp.zeros((tile_b, Hp), jnp.float32)               # h_0 = 0 (PyTorch default)
    h_T = lax.fori_loop(0, T, step, h0, unroll=True)        # T static -> fully unrolled

    # fc(h_T): lane-dense unmasked (tile_b, Op) store.
    out_ref[...] = (jnp.dot(h_T, p_ref[R_WFC:R_WFC + Hp, :Op],
                            preferred_element_type=jnp.float32)
                    + p_ref[R_BFC:R_BFC + 1, :Op])


def gru_classifier_forward(x, params):
    """x: (B, T, D) float32. Returns (B, output_size) float32."""
    B, T, D = x.shape
    w_ih, w_hh = params["w_ih"], params["w_hh"]   # (3H, D), (3H, H)
    b_ih, b_hh = params["b_ih"], params["b_hh"]   # (3H,),  (3H,)
    w_fc, b_fc = params["w_fc"], params["b_fc"]   # (O, H), (O,)
    H = w_hh.shape[1]
    O = w_fc.shape[0]

    Hp = _round_up(H, LANE)            # n-gate / hidden lane slab
    Dp = _round_up(D, SUB)             # contraction depth: sublane alignment only
    Op = _round_up(O, LANE)

    TILE_B = 8
    nB = pl.cdiv(B, TILE_B)
    Bp = nB * TILE_B

    # r|z packed into one 128-lane slab when they fit, else one slab each.
    packed_rz = (2 * H <= LANE)
    off_z = H if packed_rz else Hp
    W_rz = LANE if packed_rz else 2 * Hp
    W = W_rz + Hp                      # total gate columns
    Wcols = max(W, Op)
    gate_off = (0, off_z, W_rz)        # lane offset of r / z / n columns

    # Packed parameter block: one DMA instead of six.
    R_WIH = 0
    R_WHH = Dp
    R_WFC = Dp + Hp
    R_BGI = Dp + 2 * Hp
    R_BHN = R_BGI + 1
    R_BFC = R_BGI + 2
    P_ROWS = R_BGI + 3

    f32 = jnp.float32
    pk = jnp.zeros((P_ROWS, Wcols), f32)
    for g in range(3):
        pk = pk.at[R_WIH:R_WIH + D, gate_off[g]:gate_off[g] + H].set(
            w_ih[g * H:(g + 1) * H, :].T.astype(f32))
        pk = pk.at[R_WHH:R_WHH + H, gate_off[g]:gate_off[g] + H].set(
            w_hh[g * H:(g + 1) * H, :].T.astype(f32))
        bg = b_ih[g * H:(g + 1) * H].astype(f32)
        if g < 2:  # b_hr / b_hz are purely pre-sigmoid additive -> fold into gi
            bg = bg + b_hh[g * H:(g + 1) * H].astype(f32)
        pk = pk.at[R_BGI, gate_off[g]:gate_off[g] + H].set(bg)
    pk = pk.at[R_WFC:R_WFC + H, :O].set(w_fc.T.astype(f32))
    pk = pk.at[R_BHN, :H].set(b_hh[2 * H:3 * H].astype(f32))   # stays inside r*( )
    pk = pk.at[R_BFC, :O].set(b_fc.astype(f32))

    # x: (B,T,D) -> per-batch-tile time-major flattened rows: (nB*T*TILE_B, Dp)
    x_pad = jnp.zeros((Bp, T, Dp), f32).at[:B, :, :D].set(x.astype(f32))
    x_pack = (x_pad.reshape(nB, TILE_B, T, Dp)
                    .transpose(0, 2, 1, 3)                     # (nB, T, TILE_B, Dp)
                    .reshape(nB * T * TILE_B, Dp))

    kernel = functools.partial(
        _gru_fc_kernel, T=T, tile_b=TILE_B, Dp=Dp, Hp=Hp,
        off_z=off_z, W_rz=W_rz, W=W, Op=Op,
        rows=(R_WIH, R_WHH, R_WFC, R_BGI, R_BHN, R_BFC))

    out_p = pl.pallas_call(
        kernel,
        out_shape=jax.ShapeDtypeStruct((Bp, Op), f32),
        grid_spec=pltpu.PrefetchScalarGridSpec(
            num_scalar_prefetch=0,
            grid=(nB,),
            in_specs=[
                pl.BlockSpec((T * TILE_B, Dp), lambda b: (b, 0)),
                pl.BlockSpec((P_ROWS, Wcols), lambda b: (0, 0)),  # same block every step
            ],
            out_specs=pl.BlockSpec((TILE_B, Op), lambda b: (b, 0)),
            scratch_shapes=[pltpu.VMEM((T * TILE_B, W), f32)],
        ),
        compiler_params=pltpu.CompilerParams(
            dimension_semantics=("parallel",)),   # batch tiles -> both v7x cores
    )(x_pack, pk)

    return out_p[:B, :O]


def init_params(key, input_size=6, hidden_size=64, output_size=3):
    """Deterministic init, matching PyTorch parameter shapes (uniform +-1/sqrt(H))."""
    ks = jax.random.split(key, 6)
    bound = 1.0 / jnp.sqrt(jnp.float32(hidden_size))

    def u(k, shape):
        return jax.random.uniform(k, shape, jnp.float32, -bound, bound)

    return {
        "w_ih": u(ks[0], (3 * hidden_size, input_size)),   # weight_ih_l0
        "w_hh": u(ks[1], (3 * hidden_size, hidden_size)),  # weight_hh_l0
        "b_ih": u(ks[2], (3 * hidden_size,)),              # bias_ih_l0
        "b_hh": u(ks[3], (3 * hidden_size,)),              # bias_hh_l0
        "w_fc": u(ks[4], (output_size, hidden_size)),      # fc.weight
        "b_fc": u(ks[5], (output_size,)),                  # fc.bias
    }


def gru_classifier_reference(x, params):
    """Pure-JAX reference of the PyTorch forward, for correctness checking."""
    w_ih, w_hh = params["w_ih"], params["w_hh"]
    b_ih, b_hh = params["b_ih"], params["b_hh"]
    H = w_hh.shape[1]
    B, T, D = x.shape
    h = jnp.zeros((B, H), jnp.float32)
    for t in range(T):
        x_t = x[:, t, :]
        gi = x_t @ w_ih.T + b_ih
        gh = h @ w_hh.T + b_hh
        i_r, i_z, i_n = gi[:, :H], gi[:, H:2 * H], gi[:, 2 * H:]
        h_r, h_z, h_n = gh[:, :H], gh[:, H:2 * H], gh[:, 2 * H:]
        r = jax.nn.sigmoid(i_r + h_r)
        z = jax.nn.sigmoid(i_z + h_z)
        n = jnp.tanh(i_n + r * h_n)
        h = (1.0 - z) * n + z * h
    return h @ params["w_fc"].T + params["b_fc"]


if __name__ == "__main__":
    key = jax.random.PRNGKey(0)
    k_param, k_x = jax.random.split(key)

    B, T, D, H, O = 4, 8, 6, 64, 3
    params = init_params(k_param, input_size=D, hidden_size=H, output_size=O)
    x = jax.random.normal(k_x, (B, T, D), jnp.float32)

    out = gru_classifier_forward(x, params)
    out = jax.block_until_ready(out)

    ref = gru_classifier_reference(x, params)
    assert out.shape == (B, O)
    assert jnp.max(jnp.abs(out - ref)) < 1e-4

    print("KERNEL_OK")
</pallas_src>

<mosaic_0001>
module attributes {stable_mosaic.version = 11 : i64} {
  func.func @_gru_fc_kernel(%arg0: i32, %arg1: memref<64x8xf32, #tpu.memory_space<vmem>>, %arg2: memref<267x256xf32, #tpu.memory_space<vmem>>, %arg3: memref<8x128xf32, #tpu.memory_space<vmem>>, %arg4: memref<64x256xf32, #tpu.memory_space<vmem>>) attributes {dimension_semantics = [#tpu.dimension_semantics<parallel>], iteration_bounds = array<i64: 1>, scalar_prefetch = 0 : i64, scratch_operands = 1 : i64, tpu.core_type = #tpu.core_type<tc>, window_params = [{transform_indices = @transform_0, window_bounds = array<i64: 64, 8>}, {pipeline_mode = #tpu.pipeline_mode<synchronous>, transform_indices = @transform_1, window_bounds = array<i64: 267, 256>}, {transform_indices = @transform_2, window_bounds = array<i64: 8, 128>}]} {
    %c0 = arith.constant 0 : index
    %c0_0 = arith.constant 0 : index
    %0 = vector.load %arg2[%c0, %c0_0] : memref<267x256xf32, #tpu.memory_space<vmem>>, vector<8x256xf32>
    %c264 = arith.constant 264 : index
    %c0_1 = arith.constant 0 : index
    %1 = vector.load %arg2[%c264, %c0_1] : memref<267x256xf32, #tpu.memory_space<vmem>>, vector<1x256xf32>
    %c0_2 = arith.constant 0 : index
    %c0_3 = arith.constant 0 : index
    %2 = vector.load %arg1[%c0_2, %c0_3] : memref<64x8xf32, #tpu.memory_space<vmem>>, vector<64x8xf32>
    %cst = arith.constant dense<0.000000e+00> : vector<64x256xf32>
    %3 = tpu.matmul %2, %0, %cst {dimension_numbers = #tpu.dot_dimension_numbers<[1], [0], [0], [1], [0, 0, 1, 1], [], []>} : vector<64x8xf32>, vector<8x256xf32>, vector<64x256xf32> -> vector<64x256xf32>
    %4 = vector.broadcast %1 : vector<1x256xf32> to vector<64x256xf32>
    %5 = arith.addf %3, %4 : vector<64x256xf32>
    %c0_4 = arith.constant 0 : index
    %c0_5 = arith.constant 0 : index
    %6 = vector.load %arg4[%c0_4, %c0_5] : memref<64x256xf32, #tpu.memory_space<vmem>>, vector<64x256xf32>
    tpu.vector_store %arg4[%c0_4, %c0_5], %5 {strides = array<i32>} : memref<64x256xf32, #tpu.memory_space<vmem>>, vector<64x256xf32>,
    %c265 = arith.constant 265 : index
    %c0_6 = arith.constant 0 : index
    %7 = vector.load %arg2[%c265, %c0_6] : memref<267x256xf32, #tpu.memory_space<vmem>>, vector<1x128xf32>
    %8 = vector.shape_cast %7 : vector<1x128xf32> to vector<1x128xf32>
    %9 = vector.broadcast %8 : vector<1x128xf32> to vector<8x128xf32>
    %cst_7 = arith.constant 0.000000e+00 : f32
    %10 = vector.broadcast %cst_7 : f32 to vector<8x128xf32>
    %c0_i32 = arith.constant 0 : i32
    %c8_i32 = arith.constant 8 : i32
    %11 = arith.muli %c0_i32, %c8_i32 : i32
    %12 = tpu.assume_multiple %11, 8 : i32
    %13 = arith.index_cast %12 : i32 to index
    %c0_8 = arith.constant 0 : index
    %14 = vector.load %arg4[%13, %c0_8] : memref<64x256xf32, #tpu.memory_space<vmem>>, vector<8x256xf32>
    %c8 = arith.constant 8 : index
    %c0_9 = arith.constant 0 : index
    %15 = vector.load %arg2[%c8, %c0_9] : memref<267x256xf32, #tpu.memory_space<vmem>>, vector<128x256xf32>
    %cst_10 = arith.constant dense<0.000000e+00> : vector<8x256xf32>
    %16 = tpu.matmul %10, %15, %cst_10 {dimension_numbers = #tpu.dot_dimension_numbers<[1], [0], [0], [1], [0, 0, 1, 1], [], []>} : vector<8x128xf32>, vector<128x256xf32>, vector<8x256xf32> -> vector<8x256xf32>
    %17 = vector.extract_strided_slice %14 {offsets = [0, 0], sizes = [8, 128], strides = [1, 1]} : vector<8x256xf32> to vector<8x128xf32>
    %18 = vector.extract_strided_slice %16 {offsets = [0, 0], sizes = [8, 128], strides = [1, 1]} : vector<8x256xf32> to vector<8x128xf32>
    %19 = arith.addf %17, %18 : vector<8x128xf32>
    %20 = arith.negf %19 : vector<8x128xf32>
    %21 = math.exp %20 : vector<8x128xf32>
    %cst_11 = arith.constant 1.000000e+00 : f32
    %22 = vector.broadcast %cst_11 : f32 to vector<8x128xf32>
    %23 = arith.addf %22, %21 : vector<8x128xf32>
    %24 = arith.divf %22, %23 : vector<8x128xf32>
    %25 = vector.extract_strided_slice %14 {offsets = [0, 128], sizes = [8, 128], strides = [1, 1]} : vector<8x256xf32> to vector<8x128xf32>
    %26 = vector.extract_strided_slice %16 {offsets = [0, 128], sizes = [8, 128], strides = [1, 1]} : vector<8x256xf32> to vector<8x128xf32>
    %27 = arith.addf %26, %9 : vector<8x128xf32>
    %28 = arith.mulf %24, %27 : vector<8x128xf32>
    %29 = arith.addf %25, %28 : vector<8x128xf32>
    %30 = math.tanh %29 : vector<8x128xf32>
    %c64_i32 = arith.constant 64 : i32
    %31 = tpu.dynamic_rotate %24 by %c64_i32 dim 1 : vector<8x128xf32>, i32 -> vector<8x128xf32>
    %32 = arith.subf %10, %30 : vector<8x128xf32>
    %33 = arith.mulf %31, %32 : vector<8x128xf32>
    %34 = arith.addf %30, %33 : vector<8x128xf32>
    %c1_i32 = arith.constant 1 : i32
    %c8_i32_12 = arith.constant 8 : i32
    %35 = arith.muli %c1_i32, %c8_i32_12 : i32
    %36 = tpu.assume_multiple %35, 8 : i32
    %37 = arith.index_cast %36 : i32 to index
    %c0_13 = arith.constant 0 : index
    %38 = vector.load %arg4[%37, %c0_13] : memref<64x256xf32, #tpu.memory_space<vmem>>, vector<8x256xf32>
    %c8_14 = arith.constant 8 : index
    %c0_15 = arith.constant 0 : index
    %39 = vector.load %arg2[%c8_14, %c0_15] : memref<267x256xf32, #tpu.memory_space<vmem>>, vector<128x256xf32>
    %cst_16 = arith.constant dense<0.000000e+00> : vector<8x256xf32>
    %40 = tpu.matmul %34, %39, %cst_16 {dimension_numbers = #tpu.dot_dimension_numbers<[1], [0], [0], [1], [0, 0, 1, 1], [], []>} : vector<8x128xf32>, vector<128x256xf32>, vector<8x256xf32> -> vector<8x256xf32>
    %41 = vector.extract_strided_slice %38 {offsets = [0, 0], sizes = [8, 128], strides = [1, 1]} : vector<8x256xf32> to vector<8x128xf32>
    %42 = vector.extract_strided_slice %40 {offsets = [0, 0], sizes = [8, 128], strides = [1, 1]} : vector<8x256xf32> to vector<8x128xf32>
    %43 = arith.addf %41, %42 : vector<8x128xf32>
    %44 = arith.negf %43 : vector<8x128xf32>
    %45 = math.exp %44 : vector<8x128xf32>
    %cst_17 = arith.constant 1.000000e+00 : f32
    %46 = vector.broadcast %cst_17 : f32 to vector<8x128xf32>
    %47 = arith.addf %46, %45 : vector<8x128xf32>
    %48 = arith.divf %46, %47 : vector<8x128xf32>
    %49 = vector.extract_strided_slice %38 {offsets = [0, 128], sizes = [8, 128], strides = [1, 1]} : vector<8x256xf32> to vector<8x128xf32>
    %50 = vector.extract_strided_slice %40 {offsets = [0, 128], sizes = [8, 128], strides = [1, 1]} : vector<8x256xf32> to vector<8x128xf32>
    %51 = arith.addf %50, %9 : vector<8x128xf32>
    %52 = arith.mulf %48, %51 : vector<8x128xf32>
    %53 = arith.addf %49, %52 : vector<8x128xf32>
    %54 = math.tanh %53 : vector<8x128xf32>
    %c64_i32_18 = arith.constant 64 : i32
    %55 = tpu.dynamic_rotate %48 by %c64_i32_18 dim 1 : vector<8x128xf32>, i32 -> vector<8x128xf32>
    %56 = arith.subf %34, %54 : vector<8x128xf32>
    %57 = arith.mulf %55, %56 : vector<8x128xf32>
    %58 = arith.addf %54, %57 : vector<8x128xf32>
    %c2_i32 = arith.constant 2 : i32
    %c8_i32_19 = arith.constant 8 : i32
    %59 = arith.muli %c2_i32, %c8_i32_19 : i32
    %60 = tpu.assume_multiple %59, 8 : i32
    %61 = arith.index_cast %60 : i32 to index
    %c0_20 = arith.constant 0 : index
    %62 = vector.load %arg4[%61, %c0_20] : memref<64x256xf32, #tpu.memory_space<vmem>>, vector<8x256xf32>
    %c8_21 = arith.constant 8 : index
    %c0_22 = arith.constant 0 : index
    %63 = vector.load %arg2[%c8_21, %c0_22] : memref<267x256xf32, #tpu.memory_space<vmem>>, vector<128x256xf32>
    %cst_23 = arith.constant dense<0.000000e+00> : vector<8x256xf32>
    %64 = tpu.matmul %58, %63, %cst_23 {dimension_numbers = #tpu.dot_dimension_numbers<[1], [0], [0], [1], [0, 0, 1, 1], [], []>} : vector<8x128xf32>, vector<128x256xf32>, vector<8x256xf32> -> vector<8x256xf32>
    %65 = vector.extract_strided_slice %62 {offsets = [0, 0], sizes = [8, 128], strides = [1, 1]} : vector<8x256xf32> to vector<8x128xf32>
    %66 = vector.extract_strided_slice %64 {offsets = [0, 0], sizes = [8, 128], strides = [1, 1]} : vector<8x256xf32> to vector<8x128xf32>
    %67 = arith.addf %65, %66 : vector<8x128xf32>
    %68 = arith.negf %67 : vector<8x128xf32>
    %69 = math.exp %68 : vector<8x128xf32>
    %cst_24 = arith.constant 1.000000e+00 : f32
    %70 = vector.broadcast %cst_24 : f32 to vector<8x128xf32>
    %71 = arith.addf %70, %69 : vector<8x128xf32>
    %72 = arith.divf %70, %71 : vector<8x128xf32>
    %73 = vector.extract_strided_slice %62 {offsets = [0, 128], sizes = [8, 128], strides = [1, 1]} : vector<8x256xf32> to vector<8x128xf32>
    %74 = vector.extract_strided_slice %64 {offsets = [0, 128], sizes = [8, 128], strides = [1, 1]} : vector<8x256xf32> to vector<8x128xf32>
    %75 = arith.addf %74, %9 : vector<8x128xf32>
    %76 = arith.mulf %72, %75 : vector<8x128xf32>
    %77 = arith.addf %73, %76 : vector<8x128xf32>
    %78 = math.tanh %77 : vector<8x128xf32>
    %c64_i32_25 = arith.constant 64 : i32
    %79 = tpu.dynamic_rotate %72 by %c64_i32_25 dim 1 : vector<8x128xf32>, i32 -> vector<8x128xf32>
    %80 = arith.subf %58, %78 : vector<8x128xf32>
    %81 = arith.mulf %79, %80 : vector<8x128xf32>
    %82 = arith.addf %78, %81 : vector<8x128xf32>
    %c3_i32 = arith.constant 3 : i32
    %c8_i32_26 = arith.constant 8 : i32
    %83 = arith.muli %c3_i32, %c8_i32_26 : i32
    %84 = tpu.assume_multiple %83, 8 : i32
    %85 = arith.index_cast %84 : i32 to index
    %c0_27 = arith.constant 0 : index
    %86 = vector.load %arg4[%85, %c0_27] : memref<64x256xf32, #tpu.memory_space<vmem>>, vector<8x256xf32>
    %c8_28 = arith.constant 8 : index
    %c0_29 = arith.constant 0 : index
    %87 = vector.load %arg2[%c8_28, %c0_29] : memref<267x256xf32, #tpu.memory_space<vmem>>, vector<128x256xf32>
    %cst_30 = arith.constant dense<0.000000e+00> : vector<8x256xf32>
    %88 = tpu.matmul %82, %87, %cst_30 {dimension_numbers = #tpu.dot_dimension_numbers<[1], [0], [0], [1], [0, 0, 1, 1], [], []>} : vector<8x128xf32>, vector<128x256xf32>, vector<8x256xf32> -> vector<8x256xf32>
    %89 = vector.extract_strided_slice %86 {offsets = [0, 0], sizes = [8, 128], strides = [1, 1]} : vector<8x256xf32> to vector<8x128xf32>
    %90 = vector.extract_strided_slice %88 {offsets = [0, 0], sizes = [8, 128], strides = [1, 1]} : vector<8x256xf32> to vector<8x128xf32>
    %91 = arith.addf %89, %90 : vector<8x128xf32>
    %92 = arith.negf %91 : vector<8x128xf32>
    %93 = math.exp %92 : vector<8x128xf32>
    %cst_31 = arith.constant 1.000000e+00 : f32
    %94 = vector.broadcast %cst_31 : f32 to vector<8x128xf32>
    %95 = arith.addf %94, %93 : vector<8x128xf32>
    %96 = arith.divf %94, %95 : vector<8x128xf32>
    %97 = vector.extract_strided_slice %86 {offsets = [0, 128], sizes = [8, 128], strides = [1, 1]} : vector<8x256xf32> to vector<8x128xf32>
    %98 = vector.extract_strided_slice %88 {offsets = [0, 128], sizes = [8, 128], strides = [1, 1]} : vector<8x256xf32> to vector<8x128xf32>
    %99 = arith.addf %98, %9 : vector<8x128xf32>
    %100 = arith.mulf %96, %99 : vector<8x128xf32>
    %101 = arith.addf %97, %100 : vector<8x128xf32>
    %102 = math.tanh %101 : vector<8x128xf32>
    %c64_i32_32 = arith.constant 64 : i32
    %103 = tpu.dynamic_rotate %96 by %c64_i32_32 dim 1 : vector<8x128xf32>, i32 -> vector<8x128xf32>
    %104 = arith.subf %82, %102 : vector<8x128xf32>
    %105 = arith.mulf %103, %104 : vector<8x128xf32>
    %106 = arith.addf %102, %105 : vector<8x128xf32>
    %c4_i32 = arith.constant 4 : i32
    %c8_i32_33 = arith.constant 8 : i32
    %107 = arith.muli %c4_i32, %c8_i32_33 : i32
    %108 = tpu.assume_multiple %107, 8 : i32
    %109 = arith.index_cast %108 : i32 to index
    %c0_34 = arith.constant 0 : index
    %110 = vector.load %arg4[%109, %c0_34] : memref<64x256xf32, #tpu.memory_space<vmem>>, vector<8x256xf32>
    %c8_35 = arith.constant 8 : index
    %c0_36 = arith.constant 0 : index
    %111 = vector.load %arg2[%c8_35, %c0_36] : memref<267x256xf32, #tpu.memory_space<vmem>>, vector<128x256xf32>
    %cst_37 = arith.constant dense<0.000000e+00> : vector<8x256xf32>
    %112 = tpu.matmul %106, %111, %cst_37 {dimension_numbers = #tpu.dot_dimension_numbers<[1], [0], [0], [1], [0, 0, 1, 1], [], []>} : vector<8x128xf32>, vector<128x256xf32>, vector<8x256xf32> -> vector<8x256xf32>
    %113 = vector.extract_strided_slice %110 {offsets = [0, 0], sizes = [8, 128], strides = [1, 1]} : vector<8x256xf32> to vector<8x128xf32>
    %114 = vector.extract_strided_slice %112 {offsets = [0, 0], sizes = [8, 128], strides = [1, 1]} : vector<8x256xf32> to vector<8x128xf32>
    %115 = arith.addf %113, %114 : vector<8x128xf32>
    %116 = arith.negf %115 : vector<8x128xf32>
    %117 = math.exp %116 : vector<8x128xf32>
    %cst_38 = arith.constant 1.000000e+00 : f32
    %118 = vector.broadcast %cst_38 : f32 to vector<8x128xf32>
    %119 = arith.addf %118, %117 : vector<8x128xf32>
    %120 = arith.divf %118, %119 : vector<8x128xf32>
    %121 = vector.extract_strided_slice %110 {offsets = [0, 128], sizes = [8, 128], strides = [1, 1]} : vector<8x256xf32> to vector<8x128xf32>
    %122 = vector.extract_strided_slice %112 {offsets = [0, 128], sizes = [8, 128], strides = [1, 1]} : vector<8x256xf32> to vector<8x128xf32>
    %123 = arith.addf %122, %9 : vector<8x128xf32>
    %124 = arith.mulf %120, %123 : vector<8x128xf32>
    %125 = arith.addf %121, %124 : vector<8x128xf32>
    %126 = math.tanh %125 : vector<8x128xf32>
    %c64_i32_39 = arith.constant 64 : i32
    %127 = tpu.dynamic_rotate %120 by %c64_i32_39 dim 1 : vector<8x128xf32>, i32 -> vector<8x128xf32>
    %128 = arith.subf %106, %126 : vector<8x128xf32>
    %129 = arith.mulf %127, %128 : vector<8x128xf32>
    %130 = arith.addf %126, %129 : vector<8x128xf32>
    %c5_i32 = arith.constant 5 : i32
    %c8_i32_40 = arith.constant 8 : i32
    %131 = arith.muli %c5_i32, %c8_i32_40 : i32
    %132 = tpu.assume_multiple %131, 8 : i32
    %133 = arith.index_cast %132 : i32 to index
    %c0_41 = arith.constant 0 : index
    %134 = vector.load %arg4[%133, %c0_41] : memref<64x256xf32, #tpu.memory_space<vmem>>, vector<8x256xf32>
    %c8_42 = arith.constant 8 : index
    %c0_43 = arith.constant 0 : index
    %135 = vector.load %arg2[%c8_42, %c0_43] : memref<267x256xf32, #tpu.memory_space<vmem>>, vector<128x256xf32>
    %cst_44 = arith.constant dense<0.000000e+00> : vector<8x256xf32>
    %136 = tpu.matmul %130, %135, %cst_44 {dimension_numbers = #tpu.dot_dimension_numbers<[1], [0], [0], [1], [0, 0, 1, 1], [], []>} : vector<8x128xf32>, vector<128x256xf32>, vector<8x256xf32> -> vector<8x256xf32>
    %137 = vector.extract_strided_slice %134 {offsets = [0, 0], sizes = [8, 128], strides = [1, 1]} : vector<8x256xf32> to vector<8x128xf32>
    %138 = vector.extract_strided_slice %136 {offsets = [0, 0], sizes = [8, 128], strides = [1, 1]} : vector<8x256xf32> to vector<8x128xf32>
    %139 = arith.addf %137, %138 : vector<8x128xf32>
    %140 = arith.negf %139 : vector<8x128xf32>
    %141 = math.exp %140 : vector<8x128xf32>
    %cst_45 = arith.constant 1.000000e+00 : f32
    %142 = vector.broadcast %cst_45 : f32 to vector<8x128xf32>
    %143 = arith.addf %142, %141 : vector<8x128xf32>
    %144 = arith.divf %142, %143 : vector<8x128xf32>
    %145 = vector.extract_strided_slice %134 {offsets = [0, 128], sizes = [8, 128], strides = [1, 1]} : vector<8x256xf32> to vector<8x128xf32>
    %146 = vector.extract_strided_slice %136 {offsets = [0, 128], sizes = [8, 128], strides = [1, 1]} : vector<8x256xf32> to vector<8x128xf32>
    %147 = arith.addf %146, %9 : vector<8x128xf32>
    %148 = arith.mulf %144, %147 : vector<8x128xf32>
    %149 = arith.addf %145, %148 : vector<8x128xf32>
    %150 = math.tanh %149 : vector<8x128xf32>
    %c64_i32_46 = arith.constant 64 : i32
    %151 = tpu.dynamic_rotate %144 by %c64_i32_46 dim 1 : vector<8x128xf32>, i32 -> vector<8x128xf32>
    %152 = arith.subf %130, %150 : vector<8x128xf32>
    %153 = arith.mulf %151, %152 : vector<8x128xf32>
    %154 = arith.addf %150, %153 : vector<8x128xf32>
    %c6_i32 = arith.constant 6 : i32
    %c8_i32_47 = arith.constant 8 : i32
    %155 = arith.muli %c6_i32, %c8_i32_47 : i32
    %156 = tpu.assume_multiple %155, 8 : i32
    %157 = arith.index_cast %156 : i32 to index
    %c0_48 = arith.constant 0 : index
    %158 = vector.load %arg4[%157, %c0_48] : memref<64x256xf32, #tpu.memory_space<vmem>>, vector<8x256xf32>
    %c8_49 = arith.constant 8 : index
    %c0_50 = arith.constant 0 : index
    %159 = vector.load %arg2[%c8_49, %c0_50] : memref<267x256xf32, #tpu.memory_space<vmem>>, vector<128x256xf32>
    %cst_51 = arith.constant dense<0.000000e+00> : vector<8x256xf32>
    %160 = tpu.matmul %154, %159, %cst_51 {dimension_numbers = #tpu.dot_dimension_numbers<[1], [0], [0], [1], [0, 0, 1, 1], [], []>} : vector<8x128xf32>, vector<128x256xf32>, vector<8x256xf32> -> vector<8x256xf32>
    %161 = vector.extract_strided_slice %158 {offsets = [0, 0], sizes = [8, 128], strides = [1, 1]} : vector<8x256xf32> to vector<8x128xf32>
    %162 = vector.extract_strided_slice %160 {offsets = [0, 0], sizes = [8, 128], strides = [1, 1]} : vector<8x256xf32> to vector<8x128xf32>
    %163 = arith.addf %161, %162 : vector<8x128xf32>
    %164 = arith.negf %163 : vector<8x128xf32>
    %165 = math.exp %164 : vector<8x128xf32>
    %cst_52 = arith.constant 1.000000e+00 : f32
    %166 = vector.broadcast %cst_52 : f32 to vector<8x128xf32>
    %167 = arith.addf %166, %165 : vector<8x128xf32>
    %168 = arith.divf %166, %167 : vector<8x128xf32>
    %169 = vector.extract_strided_slice %158 {offsets = [0, 128], sizes = [8, 128], strides = [1, 1]} : vector<8x256xf32> to vector<8x128xf32>
    %170 = vector.extract_strided_slice %160 {offsets = [0, 128], sizes = [8, 128], strides = [1, 1]} : vector<8x256xf32> to vector<8x128xf32>
    %171 = arith.addf %170, %9 : vector<8x128xf32>
    %172 = arith.mulf %168, %171 : vector<8x128xf32>
    %173 = arith.addf %169, %172 : vector<8x128xf32>
    %174 = math.tanh %173 : vector<8x128xf32>
    %c64_i32_53 = arith.constant 64 : i32
    %175 = tpu.dynamic_rotate %168 by %c64_i32_53 dim 1 : vector<8x128xf32>, i32 -> vector<8x128xf32>
    %176 = arith.subf %154, %174 : vector<8x128xf32>
    %177 = arith.mulf %175, %176 : vector<8x128xf32>
    %178 = arith.addf %174, %177 : vector<8x128xf32>
    %c7_i32 = arith.constant 7 : i32
    %c8_i32_54 = arith.constant 8 : i32
    %179 = arith.muli %c7_i32, %c8_i32_54 : i32
    %180 = tpu.assume_multiple %179, 8 : i32
    %181 = arith.index_cast %180 : i32 to index
    %c0_55 = arith.constant 0 : index
    %182 = vector.load %arg4[%181, %c0_55] : memref<64x256xf32, #tpu.memory_space<vmem>>, vector<8x256xf32>
    %c8_56 = arith.constant 8 : index
    %c0_57 = arith.constant 0 : index
    %183 = vector.load %arg2[%c8_56, %c0_57] : memref<267x256xf32, #tpu.memory_space<vmem>>, vector<128x256xf32>
    %cst_58 = arith.constant dense<0.000000e+00> : vector<8x256xf32>
    %184 = tpu.matmul %178, %183, %cst_58 {dimension_numbers = #tpu.dot_dimension_numbers<[1], [0], [0], [1], [0, 0, 1, 1], [], []>} : vector<8x128xf32>, vector<128x256xf32>, vector<8x256xf32> -> vector<8x256xf32>
    %185 = vector.extract_strided_slice %182 {offsets = [0, 0], sizes = [8, 128], strides = [1, 1]} : vector<8x256xf32> to vector<8x128xf32>
    %186 = vector.extract_strided_slice %184 {offsets = [0, 0], sizes = [8, 128], strides = [1, 1]} : vector<8x256xf32> to vector<8x128xf32>
    %187 = arith.addf %185, %186 : vector<8x128xf32>
    %188 = arith.negf %187 : vector<8x128xf32>
    %189 = math.exp %188 : vector<8x128xf32>
    %cst_59 = arith.constant 1.000000e+00 : f32
    %190 = vector.broadcast %cst_59 : f32 to vector<8x128xf32>
    %191 = arith.addf %190, %189 : vector<8x128xf32>
    %192 = arith.divf %190, %191 : vector<8x128xf32>
    %193 = vector.extract_strided_slice %182 {offsets = [0, 128], sizes = [8, 128], strides = [1, 1]} : vector<8x256xf32> to vector<8x128xf32>
    %194 = vector.extract_strided_slice %184 {offsets = [0, 128], sizes = [8, 128], strides = [1, 1]} : vector<8x256xf32> to vector<8x128xf32>
    %195 = arith.addf %194, %9 : vector<8x128xf32>
    %196 = arith.mulf %192, %195 : vector<8x128xf32>
    %197 = arith.addf %193, %196 : vector<8x128xf32>
    %198 = math.tanh %197 : vector<8x128xf32>
    %c64_i32_60 = arith.constant 64 : i32
    %199 = tpu.dynamic_rotate %192 by %c64_i32_60 dim 1 : vector<8x128xf32>, i32 -> vector<8x128xf32>
    %200 = arith.subf %178, %198 : vector<8x128xf32>
    %201 = arith.mulf %199, %200 : vector<8x128xf32>
    %202 = arith.addf %198, %201 : vector<8x128xf32>
    %c8_i32_61 = arith.constant 8 : i32
    %c136 = arith.constant 136 : index
    %c0_62 = arith.constant 0 : index
    %203 = vector.load %arg2[%c136, %c0_62] : memref<267x256xf32, #tpu.memory_space<vmem>>, vector<128x128xf32>
    %cst_63 = arith.constant dense<0.000000e+00> : vector<8x128xf32>
    %204 = tpu.matmul %202, %203, %cst_63 {dimension_numbers = #tpu.dot_dimension_numbers<[1], [0], [0], [1], [0, 0, 1, 1], [], []>} : vector<8x128xf32>, vector<128x128xf32>, vector<8x128xf32> -> vector<8x128xf32>
    %c266 = arith.constant 266 : index
    %c0_64 = arith.constant 0 : index
    %205 = vector.load %arg2[%c266, %c0_64] : memref<267x256xf32, #tpu.memory_space<vmem>>, vector<1x128xf32>
    %206 = vector.broadcast %205 : vector<1x128xf32> to vector<8x128xf32>
    %207 = arith.addf %204, %206 : vector<8x128xf32>
    %c0_65 = arith.constant 0 : index
    %c0_66 = arith.constant 0 : index
    %208 = vector.load %arg3[%c0_65, %c0_66] : memref<8x128xf32, #tpu.memory_space<vmem>>, vector<8x128xf32>
    tpu.vector_store %arg3[%c0_65, %c0_66], %207 {strides = array<i32>} : memref<8x128xf32, #tpu.memory_space<vmem>>, vector<8x128xf32>,
    return
  }
  func.func @transform_0(%arg0: i32) -> (i32, i32) {
    %c0_i32 = arith.constant 0 : i32
    %c0_i32_0 = arith.constant 0 : i32
    return %arg0, %c0_i32 : i32, i32
  }
  func.func @transform_1(%arg0: i32) -> (i32, i32) {
    %c0_i32 = arith.constant 0 : i32
    %c0_i32_0 = arith.constant 0 : i32
    %c0_i32_1 = arith.constant 0 : i32
    return %c0_i32, %c0_i32_0 : i32, i32
  }
  func.func @transform_2(%arg0: i32) -> (i32, i32) {
    %c0_i32 = arith.constant 0 : i32
    %c0_i32_0 = arith.constant 0 : i32
    return %arg0, %c0_i32 : i32, i32
  }
}

</mosaic_0001>

<llo_original>
// kernel: tpu_custom_call.1
$region0: #{tpu_custom_call.1}
  #allocation0 [shape = 'u32[]', space=smem, size = 0x4, offset = 0x4, fixed_abs, tag = 'smem constant byte address 0x4 - core index']
  #allocation1 [shape = 'u32[72,128]{1,0:T(1,128)}', space=vmem, size = 0x9000, scoped, tag = 'internal scratch']
  #allocation2 [shape = 'f32[64,256]{1,0:T(8,128)}', space=vmem, size = 0x10000, scoped, tag = 'scratch operand']
  %s0 = inlined_call_operand.vmem [shape: f32[64,8], index: 0, kind: input, shape index: {}]
  %s1 = inlined_call_operand.hbm [shape: f32[267,256], index: 1, kind: input, shape index: {}]
  %s2 = inlined_call_operand.hbm [shape: f32[8,128], index: 2, kind: output, shape index: {}]
  %s3 = sld [smem:[#allocation0]]
  $region22: #{tpu_custom_call.1} parent=0
    _
  %s5 = ssub.s32 1, %s3
  %s6 = scalar_select 0, %s5, %s3
  $region1: #{tpu_custom_call.1} parent=0
    #allocation3 [shape = 'u8[278528]{0}', space=vmem, size = 0x44000, scoped, tag = 'input window, operand 1, single buffered']
    #allocation4 [shape = 's32[1]{0}', space=sflag, size = 0x4, scoped, tag = 'scoped memory for tpu_custom_call.1']
    #allocation5 [shape = 's32[1]{0}', space=sflag, size = 0x4, scoped, tag = 'scoped memory for tpu_custom_call.1']
    #allocation6 [shape = 'u8[4096]{0}', space=vmem, size = 0x1000, scoped, tag = 'output window, operand 0, single buffered']
    %7 = vsyncpa [#allocation4], 0
    %8 = vsyncpa [#allocation5], 0
    // Predicated region
    $region2: #{tpu_custom_call.1} parent=1 // pred_check
      _
    $region3: #{tpu_custom_call.1} parent=1 // pred_check_branch
      %10 = sbr.rel (0) target = $region5
    $region4: #{tpu_custom_call.1} parent=1 // pred_region
      _
    $region5: #{tpu_custom_call.1} parent=1 // pred_fallthru
      _
    // Predicated region
    $region6: #{tpu_custom_call.1} parent=1 // pred_check
      _
    $region7: #{tpu_custom_call.1} parent=1 // pred_check_branch
      %12 = sbr.rel (0) target = $region9
    $region8: #{tpu_custom_call.1} parent=1 // pred_region
      %14 = vsyncadd [#allocation4], 0
      %s15 = sshll.u32 %s1, 4
      %s16 = int_to_ptr.hbm [resolvable:$true] %s15
      %s17 = sshll.u32 [#allocation3], 4
      %s18 = int_to_ptr.vmem [resolvable:$true] %s17
      %23 = dma.hbm_to_vmem [thread:$0]  %s16, 8704, %s18, [#allocation4], 256, 256, 16
    $region9: #{tpu_custom_call.1} parent=1 // pred_fallthru
      _
    // Predicated region
    $region10: #{tpu_custom_call.1} parent=1 // pred_check
      _
    $region11: #{tpu_custom_call.1} parent=1 // pred_check_branch
      %25 = sbr.rel (0) target = $region13
    $region12: #{tpu_custom_call.1} parent=1 // pred_region
      %27 = dma.done [#allocation4], 8704
    $region13: #{tpu_custom_call.1} parent=1 // pred_fallthru
      _
    %v28 = vld [vmem:[#allocation3] sm:$0xff]
    %v29 = vld [vmem:[#allocation3 + $0x8] sm:$0xff]
    %s30 = scalar_lea.vmem [#allocation3], 528
    %v31 = vld [vmem:[%s30] ss:$8 sm:$0x3]
    %v32 = vld [vmem:[%s0] sm:$0xff]
    %v33 = vld [vmem:[%s0 + $0x8] sm:$0xff]
    %v34 = vld [vmem:[%s0 + $0x10] sm:$0xff]
    %v35 = vld [vmem:[%s0 + $0x18] sm:$0xff]
    %v36 = vld [vmem:[%s0 + $0x20] sm:$0xff]
    %v37 = vld [vmem:[%s0 + $0x28] sm:$0xff]
    %v38 = vld [vmem:[%s0 + $0x30] sm:$0xff]
    %v39 = vld [vmem:[%s0 + $0x38] sm:$0xff]
    %v41 = vperm.slane %v31, 0
    %v42 = vperm.slane %v31, 1
    %vm45 = vcmask 64512
    %v47 = vsel %vm45, %v32, 0
    %v50 = vsel %vm45, %v33, 0
    %v53 = vsel %vm45, %v34, 0
    %v56 = vsel %vm45, %v35, 0
    %v59 = vsel %vm45, %v36, 0
    %v62 = vsel %vm45, %v37, 0
    %v65 = vsel %vm45, %v38, 0
    %v68 = vsel %vm45, %v39, 0
    %70 = vmatpush.msra.mxu0 0.0
    %71 = vmatpush.msra.mxu0 0.0
    %72 = vmatpush.msra.mxu0 0.0
    %73 = vmatpush.msra.mxu0 0.0
    %74 = vmatpush.msra.mxu0 0.0
    %75 = vmatpush.msra.mxu0 0.0
    %76 = vmatpush.msra.mxu0 0.0
    %77 = vmatpush.msra.mxu0 0.0
    %78 = vmatpush.msra.mxu0 0.0
    %79 = vmatpush.msra.mxu0 0.0
    %80 = vmatpush.msra.mxu0 0.0
    %81 = vmatpush.msra.mxu0 0.0
    %82 = vmatpush.msra.mxu0 0.0
    %83 = vmatpush.msra.mxu0 0.0
    %84 = vmatpush.msra.mxu0 0.0
    %85 = vmatpush.msra.mxu0 %v28
    %86 = vmatmul.f32.gmra.mxu0 %v47
    %v87 = vpop.f32.mrf.mxu0
    %v88 = vadd.f32 %v41, %v87
    %89 = vmatmul.f32.gmra.mxu0 %v50
    %v90 = vpop.f32.mrf.mxu0
    %v91 = vadd.f32 %v41, %v90
    %92 = vmatmul.f32.gmra.mxu0 %v53
    %v93 = vpop.f32.mrf.mxu0
    %v94 = vadd.f32 %v41, %v93
    %95 = vmatmul.f32.gmra.mxu0 %v56
    %v96 = vpop.f32.mrf.mxu0
    %v97 = vadd.f32 %v41, %v96
    %98 = vmatmul.f32.gmra.mxu0 %v59
    %v99 = vpop.f32.mrf.mxu0
    %v100 = vadd.f32 %v41, %v99
    %101 = vmatmul.f32.gmra.mxu0 %v62
    %v102 = vpop.f32.mrf.mxu0
    %v103 = vadd.f32 %v41, %v102
    %104 = vmatmul.f32.gmra.mxu0 %v65
    %v105 = vpop.f32.mrf.mxu0
    %v106 = vadd.f32 %v41, %v105
    %107 = vmatmul.f32.gmra.mxu0 %v68
    %v108 = vpop.f32.mrf.mxu0
    %v109 = vadd.f32 %v41, %v108
    %110 = vdwg.mxu0
    %111 = vmatpush.msra.mxu0 0.0
    %112 = vmatpush.msra.mxu0 0.0
    %113 = vmatpush.msra.mxu0 0.0
    %114 = vmatpush.msra.mxu0 0.0
    %115 = vmatpush.msra.mxu0 0.0
    %116 = vmatpush.msra.mxu0 0.0
    %117 = vmatpush.msra.mxu0 0.0
    %118 = vmatpush.msra.mxu0 0.0
    %119 = vmatpush.msra.mxu0 0.0
    %120 = vmatpush.msra.mxu0 0.0
    %121 = vmatpush.msra.mxu0 0.0
    %122 = vmatpush.msra.mxu0 0.0
    %123 = vmatpush.msra.mxu0 0.0
    %124 = vmatpush.msra.mxu0 0.0
    %125 = vmatpush.msra.mxu0 0.0
    %126 = vmatpush.msra.mxu0 %v29
    %127 = vmatmul.f32.gmra.mxu0 %v47
    %v128 = vpop.f32.mrf.mxu0
    %v129 = vadd.f32 %v42, %v128
    %130 = vmatmul.f32.gmra.mxu0 %v50
    %v131 = vpop.f32.mrf.mxu0
    %v132 = vadd.f32 %v42, %v131
    %133 = vmatmul.f32.gmra.mxu0 %v53
    %v134 = vpop.f32.mrf.mxu0
    %v135 = vadd.f32 %v42, %v134
    %136 = vmatmul.f32.gmra.mxu0 %v56
    %v137 = vpop.f32.mrf.mxu0
    %v138 = vadd.f32 %v42, %v137
    %139 = vmatmul.f32.gmra.mxu0 %v59
    %v140 = vpop.f32.mrf.mxu0
    %v141 = vadd.f32 %v42, %v140
    %142 = vmatmul.f32.gmra.mxu0 %v62
    %v143 = vpop.f32.mrf.mxu0
    %v144 = vadd.f32 %v42, %v143
    %145 = vmatmul.f32.gmra.mxu0 %v65
    %v146 = vpop.f32.mrf.mxu0
    %v147 = vadd.f32 %v42, %v146
    %148 = vmatmul.f32.gmra.mxu0 %v68
    %v149 = vpop.f32.mrf.mxu0
    %v150 = vadd.f32 %v42, %v149
    %151 = vdwg.mxu0
    %152 = vst [vmem:[#allocation2] sm:$0xff] %v88
    %153 = vst [vmem:[#allocation2 + $0x8] sm:$0xff] %v129
    %154 = vst [vmem:[#allocation2 + $0x10] sm:$0xff] %v91
    %155 = vst [vmem:[#allocation2 + $0x18] sm:$0xff] %v132
    %156 = vst [vmem:[#allocation2 + $0x20] sm:$0xff] %v94
    %157 = vst [vmem:[#allocation2 + $0x28] sm:$0xff] %v135
    %158 = vst [vmem:[#allocation2 + $0x30] sm:$0xff] %v97
    %159 = vst [vmem:[#allocation2 + $0x38] sm:$0xff] %v138
    %160 = vst [vmem:[#allocation2 + $0x40] sm:$0xff] %v100
    %161 = vst [vmem:[#allocation2 + $0x48] sm:$0xff] %v141
    %162 = vst [vmem:[#allocation2 + $0x50] sm:$0xff] %v103
    %163 = vst [vmem:[#allocation2 + $0x58] sm:$0xff] %v144
    %164 = vst [vmem:[#allocation2 + $0x60] sm:$0xff] %v106
    %165 = vst [vmem:[#allocation2 + $0x68] sm:$0xff] %v147
    %166 = vst [vmem:[#allocation2 + $0x70] sm:$0xff] %v109
    %167 = vst [vmem:[#allocation2 + $0x78] sm:$0xff] %v150
    %v168 = vld [vmem:[#allocation3 + $0x211] ss:$0 sm:$0xff]
    %s169 = smul.u32 0, 2
    %s170 = smul.addr %s169, 8
    %s171 = scalar_lea.vmem [#allocation2], %s170
    %v172 = vld [vmem:[%s171] sm:$0xff]
    %v173 = vld [vmem:[%s171 + $0x8] sm:$0xff]
    %v174 = vld [vmem:[#allocation3 + $0x10] sm:$0xff]
    %v175 = vld [vmem:[#allocation3 + $0x18] sm:$0xff]
    %v176 = vld [vmem:[#allocation3 + $0x20] sm:$0xff]
    %v177 = vld [vmem:[#allocation3 + $0x28] sm:$0xff]
    %v178 = vld [vmem:[#allocation3 + $0x30] sm:$0xff]
    %v179 = vld [vmem:[#allocation3 + $0x38] sm:$0xff]
    %v180 = vld [vmem:[#allocation3 + $0x40] sm:$0xff]
    %v181 = vld [vmem:[#allocation3 + $0x48] sm:$0xff]
    %v182 = vld [vmem:[#allocation3 + $0x50] sm:$0xff]
    %v183 = vld [vmem:[#allocation3 + $0x58] sm:$0xff]
    %v184 = vld [vmem:[#allocation3 + $0x60] sm:$0xff]
    %v185 = vld [vmem:[#allocation3 + $0x68] sm:$0xff]
    %v186 = vld [vmem:[#allocation3 + $0x70] sm:$0xff]
    %v187 = vld [vmem:[#allocation3 + $0x78] sm:$0xff]
    %v188 = vld [vmem:[#allocation3 + $0x80] sm:$0xff]
    %v189 = vld [vmem:[#allocation3 + $0x88] sm:$0xff]
    %v190 = vld [vmem:[#allocation3 + $0x90] sm:$0xff]
    %v191 = vld [vmem:[#allocation3 + $0x98] sm:$0xff]
    %v192 = vld [vmem:[#allocation3 + $0xa0] sm:$0xff]
    %v193 = vld [vmem:[#allocation3 + $0xa8] sm:$0xff]
    %v194 = vld [vmem:[#allocation3 + $0xb0] sm:$0xff]
    %v195 = vld [vmem:[#allocation3 + $0xb8] sm:$0xff]
    %v196 = vld [vmem:[#allocation3 + $0xc0] sm:$0xff]
    %v197 = vld [vmem:[#allocation3 + $0xc8] sm:$0xff]
    %v198 = vld [vmem:[#allocation3 + $0xd0] sm:$0xff]
    %v199 = vld [vmem:[#allocation3 + $0xd8] sm:$0xff]
    %v200 = vld [vmem:[#allocation3 + $0xe0] sm:$0xff]
    %v201 = vld [vmem:[#allocation3 + $0xe8] sm:$0xff]
    %v202 = vld [vmem:[#allocation3 + $0xf0] sm:$0xff]
    %v203 = vld [vmem:[#allocation3 + $0xf8] sm:$0xff]
    %v204 = vld [vmem:[#allocation3 + $0x100] sm:$0xff]
    %v205 = vld [vmem:[#allocation3 + $0x108] sm:$0xff]
    %206 = vmatpush.msra.mxu0 %v204
    %207 = vmatpush.msra.mxu0 %v202
    %208 = vmatpush.msra.mxu0 %v200
    %209 = vmatpush.msra.mxu0 %v198
    %210 = vmatpush.msra.mxu0 %v196
    %211 = vmatpush.msra.mxu0 %v194
    %212 = vmatpush.msra.mxu0 %v192
    %213 = vmatpush.msra.mxu0 %v190
    %214 = vmatpush.msra.mxu0 %v188
    %215 = vmatpush.msra.mxu0 %v186
    %216 = vmatpush.msra.mxu0 %v184
    %217 = vmatpush.msra.mxu0 %v182
    %218 = vmatpush.msra.mxu0 %v180
    %219 = vmatpush.msra.mxu0 %v178
    %220 = vmatpush.msra.mxu0 %v176
    %221 = vmatpush.msra.mxu0 %v174
    %222 = vmatmul.f32.gmra.mxu0 0.0
    %v223 = vpop.f32.mrf.mxu0
    %v224 = vadd.f32 0.0, %v223
    %225 = vdwg.mxu0
    %226 = vmatpush.msra.mxu0 %v205
    %227 = vmatpush.msra.mxu0 %v203
    %228 = vmatpush.msra.mxu0 %v201
    %229 = vmatpush.msra.mxu0 %v199
    %230 = vmatpush.msra.mxu0 %v197
    %231 = vmatpush.msra.mxu0 %v195
    %232 = vmatpush.msra.mxu0 %v193
    %233 = vmatpush.msra.mxu0 %v191
    %234 = vmatpush.msra.mxu0 %v189
    %235 = vmatpush.msra.mxu0 %v187
    %236 = vmatpush.msra.mxu0 %v185
    %237 = vmatpush.msra.mxu0 %v183
    %238 = vmatpush.msra.mxu0 %v181
    %239 = vmatpush.msra.mxu0 %v179
    %240 = vmatpush.msra.mxu0 %v177
    %241 = vmatpush.msra.mxu0 %v175
    %242 = vmatmul.f32.gmra.mxu0 0.0
    %v243 = vpop.f32.mrf.mxu0
    %v244 = vadd.f32 0.0, %v243
    %245 = vdwg.mxu0
    %v246 = vadd.f32 %v172, %v224
    %v247 = vxor.u32 %v246, 2147483648
    %v248 = vmul.f32 %v247, 1.442695
    %v249 = vpow.pop %v248
    %v250 = vadd.f32 %v249, 1.0
    %v251 = vrcp.pop %v250
    %v252 = vmul.f32 %v250, %v251
    %v253 = vsub.f32 1.0, %v252
    %v254 = vmul.f32 %v251, %v253
    %v255 = vadd.f32 %v251, %v254
    %vm256 = vweird.f32 %v250
    %vm257 = vweird.f32 %v251
    %vm258 = vmor %vm256, %vm257
    %v259 = vsel %vm258, %v251, %v255
    %v260 = vand.u32 2147483647, %v250
    %vm261 = vcmp.eq.f32.partialorder %v260, 8.507059e+37
    %v262 = vand.u32 %v250, 2147483648
    %v263 = vor.u32 1.1754944e-38, %v262
    %v264 = vsel %vm261, %v263, %v259
    %v265 = vmul.f32 1.0, %v264
    %v266 = vadd.f32 %v244, %v168
    %v267 = vmul.f32 %v265, %v266
    %v268 = vadd.f32 %v173, %v267
    %v269 = vtanh.pop %v268
    %270 = vrot.lane.b32.xlu0 %v265, 64
    %v271 = vpop.permute.xlu0 %270
    %v272 = vsub.f32 0.0, %v269
    %v273 = vmul.f32 %v271, %v272
    %v274 = vadd.f32 %v269, %v273
    %s275 = smul.u32 1, 2
    %s276 = smul.addr %s275, 8
    %s277 = scalar_lea.vmem [#allocation2], %s276
    %v278 = vld [vmem:[%s277] sm:$0xff]
    %v279 = vld [vmem:[%s277 + $0x8] sm:$0xff]
    %280 = vmatpush.msra.mxu0 %v204
    %281 = vmatpush.msra.mxu0 %v202
    %282 = vmatpush.msra.mxu0 %v200
    %283 = vmatpush.msra.mxu0 %v198
    %284 = vmatpush.msra.mxu0 %v196
    %285 = vmatpush.msra.mxu0 %v194
    %286 = vmatpush.msra.mxu0 %v192
    %287 = vmatpush.msra.mxu0 %v190
    %288 = vmatpush.msra.mxu0 %v188
    %289 = vmatpush.msra.mxu0 %v186
    %290 = vmatpush.msra.mxu0 %v184
    %291 = vmatpush.msra.mxu0 %v182
    %292 = vmatpush.msra.mxu0 %v180
    %293 = vmatpush.msra.mxu0 %v178
    %294 = vmatpush.msra.mxu0 %v176
    %295 = vmatpush.msra.mxu0 %v174
    %296 = vmatmul.f32.gmra.mxu0 %v274
    %v297 = vpop.f32.mrf.mxu0
    %v298 = vadd.f32 0.0, %v297
    %299 = vdwg.mxu0
    %300 = vmatpush.msra.mxu0 %v205
    %301 = vmatpush.msra.mxu0 %v203
    %302 = vmatpush.msra.mxu0 %v201
    %303 = vmatpush.msra.mxu0 %v199
    %304 = vmatpush.msra.mxu0 %v197
    %305 = vmatpush.msra.mxu0 %v195
    %306 = vmatpush.msra.mxu0 %v193
    %307 = vmatpush.msra.mxu0 %v191
    %308 = vmatpush.msra.mxu0 %v189
    %309 = vmatpush.msra.mxu0 %v187
    %310 = vmatpush.msra.mxu0 %v185
    %311 = vmatpush.msra.mxu0 %v183
    %312 = vmatpush.msra.mxu0 %v181
    %313 = vmatpush.msra.mxu0 %v179
    %314 = vmatpush.msra.mxu0 %v177
    %315 = vmatpush.msra.mxu0 %v175
    %316 = vmatmul.f32.gmra.mxu0 %v274
    %v317 = vpop.f32.mrf.mxu0
    %v318 = vadd.f32 0.0, %v317
    %319 = vdwg.mxu0
    %v320 = vadd.f32 %v278, %v298
    %v321 = vxor.u32 %v320, 2147483648
    %v322 = vmul.f32 %v321, 1.442695
    %v323 = vpow.pop %v322
    %v324 = vadd.f32 %v323, 1.0
    %v325 = vrcp.pop %v324
    %v326 = vmul.f32 %v324, %v325
    %v327 = vsub.f32 1.0, %v326
    %v328 = vmul.f32 %v325, %v327
    %v329 = vadd.f32 %v325, %v328
    %vm330 = vweird.f32 %v324
    %vm331 = vweird.f32 %v325
    %vm332 = vmor %vm330, %vm331
    %v333 = vsel %vm332, %v325, %v329
    %v334 = vand.u32 2147483647, %v324
    %vm335 = vcmp.eq.f32.partialorder %v334, 8.507059e+37
    %v336 = vand.u32 %v324, 2147483648
    %v337 = vor.u32 1.1754944e-38, %v336
    %v338 = vsel %vm335, %v337, %v333
    %v339 = vmul.f32 1.0, %v338
    %v340 = vadd.f32 %v318, %v168
    %v341 = vmul.f32 %v339, %v340
    %v342 = vadd.f32 %v279, %v341
    %v343 = vtanh.pop %v342
    %344 = vrot.lane.b32.xlu0 %v339, 64
    %v345 = vpop.permute.xlu0 %344
    %v346 = vsub.f32 %v274, %v343
    %v347 = vmul.f32 %v345, %v346
    %v348 = vadd.f32 %v343, %v347
    %s349 = smul.u32 2, 2
    %s350 = smul.addr %s349, 8
    %s351 = scalar_lea.vmem [#allocation2], %s350
    %v352 = vld [vmem:[%s351] sm:$0xff]
    %v353 = vld [vmem:[%s351 + $0x8] sm:$0xff]
    %354 = vmatpush.msra.mxu0 %v204
    %355 = vmatpush.msra.mxu0 %v202
    %356 = vmatpush.msra.mxu0 %v200
    %357 = vmatpush.msra.mxu0 %v198
    %358 = vmatpush.msra.mxu0 %v196
    %359 = vmatpush.msra.mxu0 %v194
    %360 = vmatpush.msra.mxu0 %v192
    %361 = vmatpush.msra.mxu0 %v190
    %362 = vmatpush.msra.mxu0 %v188
    %363 = vmatpush.msra.mxu0 %v186
    %364 = vmatpush.msra.mxu0 %v184
    %365 = vmatpush.msra.mxu0 %v182
    %366 = vmatpush.msra.mxu0 %v180
    %367 = vmatpush.msra.mxu0 %v178
    %368 = vmatpush.msra.mxu0 %v176
    %369 = vmatpush.msra.mxu0 %v174
    %370 = vmatmul.f32.gmra.mxu0 %v348
    %v371 = vpop.f32.mrf.mxu0
    %v372 = vadd.f32 0.0, %v371
    %373 = vdwg.mxu0
    %374 = vmatpush.msra.mxu0 %v205
    %375 = vmatpush.msra.mxu0 %v203
    %376 = vmatpush.msra.mxu0 %v201
    %377 = vmatpush.msra.mxu0 %v199
    %378 = vmatpush.msra.mxu0 %v197
    %379 = vmatpush.msra.mxu0 %v195
    %380 = vmatpush.msra.mxu0 %v193
    %381 = vmatpush.msra.mxu0 %v191
    %382 = vmatpush.msra.mxu0 %v189
    %383 = vmatpush.msra.mxu0 %v187
    %384 = vmatpush.msra.mxu0 %v185
    %385 = vmatpush.msra.mxu0 %v183
    %386 = vmatpush.msra.mxu0 %v181
    %387 = vmatpush.msra.mxu0 %v179
    %388 = vmatpush.msra.mxu0 %v177
    %389 = vmatpush.msra.mxu0 %v175
    %390 = vmatmul.f32.gmra.mxu0 %v348
    %v391 = vpop.f32.mrf.mxu0
    %v392 = vadd.f32 0.0, %v391
    %393 = vdwg.mxu0
    %v394 = vadd.f32 %v352, %v372
    %v395 = vxor.u32 %v394, 2147483648
    %v396 = vmul.f32 %v395, 1.442695
    %v397 = vpow.pop %v396
    %v398 = vadd.f32 %v397, 1.0
    %v399 = vrcp.pop %v398
    %v400 = vmul.f32 %v398, %v399
    %v401 = vsub.f32 1.0, %v400
    %v402 = vmul.f32 %v399, %v401
    %v403 = vadd.f32 %v399, %v402
    %vm404 = vweird.f32 %v398
    %vm405 = vweird.f32 %v399
    %vm406 = vmor %vm404, %vm405
    %v407 = vsel %vm406, %v399, %v403
    %v408 = vand.u32 2147483647, %v398
    %vm409 = vcmp.eq.f32.partialorder %v408, 8.507059e+37
    %v410 = vand.u32 %v398, 2147483648
    %v411 = vor.u32 1.1754944e-38, %v410
    %v412 = vsel %vm409, %v411, %v407
    %v413 = vmul.f32 1.0, %v412
    %v414 = vadd.f32 %v392, %v168
    %v415 = vmul.f32 %v413, %v414
    %v416 = vadd.f32 %v353, %v415
    %v417 = vtanh.pop %v416
    %418 = vrot.lane.b32.xlu0 %v413, 64
    %v419 = vpop.permute.xlu0 %418
    %v420 = vsub.f32 %v348, %v417
    %v421 = vmul.f32 %v419, %v420
    %v422 = vadd.f32 %v417, %v421
    %s423 = smul.u32 3, 2
    %s424 = smul.addr %s423, 8
    %s425 = scalar_lea.vmem [#allocation2], %s424
    %v426 = vld [vmem:[%s425] sm:$0xff]
    %v427 = vld [vmem:[%s425 + $0x8] sm:$0xff]
    %428 = vmatpush.msra.mxu0 %v204
    %429 = vmatpush.msra.mxu0 %v202
    %430 = vmatpush.msra.mxu0 %v200
    %431 = vmatpush.msra.mxu0 %v198
    %432 = vmatpush.msra.mxu0 %v196
    %433 = vmatpush.msra.mxu0 %v194
    %434 = vmatpush.msra.mxu0 %v192
    %435 = vmatpush.msra.mxu0 %v190
    %436 = vmatpush.msra.mxu0 %v188
    %437 = vmatpush.msra.mxu0 %v186
    %438 = vmatpush.msra.mxu0 %v184
    %439 = vmatpush.msra.mxu0 %v182
    %440 = vmatpush.msra.mxu0 %v180
    %441 = vmatpush.msra.mxu0 %v178
    %442 = vmatpush.msra.mxu0 %v176
    %443 = vmatpush.msra.mxu0 %v174
    %444 = vmatmul.f32.gmra.mxu0 %v422
    %v445 = vpop.f32.mrf.mxu0
    %v446 = vadd.f32 0.0, %v445
    %447 = vdwg.mxu0
    %448 = vmatpush.msra.mxu0 %v205
    %449 = vmatpush.msra.mxu0 %v203
    %450 = vmatpush.msra.mxu0 %v201
    %451 = vmatpush.msra.mxu0 %v199
    %452 = vmatpush.msra.mxu0 %v197
    %453 = vmatpush.msra.mxu0 %v195
    %454 = vmatpush.msra.mxu0 %v193
    %455 = vmatpush.msra.mxu0 %v191
    %456 = vmatpush.msra.mxu0 %v189
    %457 = vmatpush.msra.mxu0 %v187
    %458 = vmatpush.msra.mxu0 %v185
    %459 = vmatpush.msra.mxu0 %v183
    %460 = vmatpush.msra.mxu0 %v181
    %461 = vmatpush.msra.mxu0 %v179
    %462 = vmatpush.msra.mxu0 %v177
    %463 = vmatpush.msra.mxu0 %v175
    %464 = vmatmul.f32.gmra.mxu0 %v422
    %v465 = vpop.f32.mrf.mxu0
    %v466 = vadd.f32 0.0, %v465
    %467 = vdwg.mxu0
    %v468 = vadd.f32 %v426, %v446
    %v469 = vxor.u32 %v468, 2147483648
    %v470 = vmul.f32 %v469, 1.442695
    %v471 = vpow.pop %v470
    %v472 = vadd.f32 %v471, 1.0
    %v473 = vrcp.pop %v472
    %v474 = vmul.f32 %v472, %v473
    %v475 = vsub.f32 1.0, %v474
    %v476 = vmul.f32 %v473, %v475
    %v477 = vadd.f32 %v473, %v476
    %vm478 = vweird.f32 %v472
    %vm479 = vweird.f32 %v473
    %vm480 = vmor %vm478, %vm479
    %v481 = vsel %vm480, %v473, %v477
    %v482 = vand.u32 2147483647, %v472
    %vm483 = vcmp.eq.f32.partialorder %v482, 8.507059e+37
    %v484 = vand.u32 %v472, 2147483648
    %v485 = vor.u32 1.1754944e-38, %v484
    %v486 = vsel %vm483, %v485, %v481
    %v487 = vmul.f32 1.0, %v486
    %v488 = vadd.f32 %v466, %v168
    %v489 = vmul.f32 %v487, %v488
    %v490 = vadd.f32 %v427, %v489
    %v491 = vtanh.pop %v490
    %492 = vrot.lane.b32.xlu0 %v487, 64
    %v493 = vpop.permute.xlu0 %492
    %v494 = vsub.f32 %v422, %v491
    %v495 = vmul.f32 %v493, %v494
    %v496 = vadd.f32 %v491, %v495
    %s497 = smul.u32 4, 2
    %s498 = smul.addr %s497, 8
    %s499 = scalar_lea.vmem [#allocation2], %s498
    %v500 = vld [vmem:[%s499] sm:$0xff]
    %v501 = vld [vmem:[%s499 + $0x8] sm:$0xff]
    %502 = vmatpush.msra.mxu0 %v204
    %503 = vmatpush.msra.mxu0 %v202
    %504 = vmatpush.msra.mxu0 %v200
    %505 = vmatpush.msra.mxu0 %v198
    %506 = vmatpush.msra.mxu0 %v196
    %507 = vmatpush.msra.mxu0 %v194
    %508 = vmatpush.msra.mxu0 %v192
    %509 = vmatpush.msra.mxu0 %v190
    %510 = vmatpush.msra.mxu0 %v188
    %511 = vmatpush.msra.mxu0 %v186
    %512 = vmatpush.msra.mxu0 %v184
    %513 = vmatpush.msra.mxu0 %v182
    %514 = vmatpush.msra.mxu0 %v180
    %515 = vmatpush.msra.mxu0 %v178
    %516 = vmatpush.msra.mxu0 %v176
    %517 = vmatpush.msra.mxu0 %v174
    %518 = vmatmul.f32.gmra.mxu0 %v496
    %v519 = vpop.f32.mrf.mxu0
    %v520 = vadd.f32 0.0, %v519
    %521 = vdwg.mxu0
    %522 = vmatpush.msra.mxu0 %v205
    %523 = vmatpush.msra.mxu0 %v203
    %524 = vmatpush.msra.mxu0 %v201
    %525 = vmatpush.msra.mxu0 %v199
    %526 = vmatpush.msra.mxu0 %v197
    %527 = vmatpush.msra.mxu0 %v195
    %528 = vmatpush.msra.mxu0 %v193
    %529 = vmatpush.msra.mxu0 %v191
    %530 = vmatpush.msra.mxu0 %v189
    %531 = vmatpush.msra.mxu0 %v187
    %532 = vmatpush.msra.mxu0 %v185
    %533 = vmatpush.msra.mxu0 %v183
    %534 = vmatpush.msra.mxu0 %v181
    %535 = vmatpush.msra.mxu0 %v179
    %536 = vmatpush.msra.mxu0 %v177
    %537 = vmatpush.msra.mxu0 %v175
    %538 = vmatmul.f32.gmra.mxu0 %v496
    %v539 = vpop.f32.mrf.mxu0
    %v540 = vadd.f32 0.0, %v539
    %541 = vdwg.mxu0
    %v542 = vadd.f32 %v500, %v520
    %v543 = vxor.u32 %v542, 2147483648
    %v544 = vmul.f32 %v543, 1.442695
    %v545 = vpow.pop %v544
    %v546 = vadd.f32 %v545, 1.0
    %v547 = vrcp.pop %v546
    %v548 = vmul.f32 %v546, %v547
    %v549 = vsub.f32 1.0, %v548
    %v550 = vmul.f32 %v547, %v549
    %v551 = vadd.f32 %v547, %v550
    %vm552 = vweird.f32 %v546
    %vm553 = vweird.f32 %v547
    %vm554 = vmor %vm552, %vm553
    %v555 = vsel %vm554, %v547, %v551
    %v556 = vand.u32 2147483647, %v546
    %vm557 = vcmp.eq.f32.partialorder %v556, 8.507059e+37
    %v558 = vand.u32 %v546, 2147483648
    %v559 = vor.u32 1.1754944e-38, %v558
    %v560 = vsel %vm557, %v559, %v555
    %v561 = vmul.f32 1.0, %v560
    %v562 = vadd.f32 %v540, %v168
    %v563 = vmul.f32 %v561, %v562
    %v564 = vadd.f32 %v501, %v563
    %v565 = vtanh.pop %v564
    %566 = vrot.lane.b32.xlu0 %v561, 64
    %v567 = vpop.permute.xlu0 %566
    %v568 = vsub.f32 %v496, %v565
    %v569 = vmul.f32 %v567, %v568
    %v570 = vadd.f32 %v565, %v569
    %s571 = smul.u32 5, 2
    %s572 = smul.addr %s571, 8
    %s573 = scalar_lea.vmem [#allocation2], %s572
    %v574 = vld [vmem:[%s573] sm:$0xff]
    %v575 = vld [vmem:[%s573 + $0x8] sm:$0xff]
    %576 = vmatpush.msra.mxu0 %v204
    %577 = vmatpush.msra.mxu0 %v202
    %578 = vmatpush.msra.mxu0 %v200
    %579 = vmatpush.msra.mxu0 %v198
    %580 = vmatpush.msra.mxu0 %v196
    %581 = vmatpush.msra.mxu0 %v194
    %582 = vmatpush.msra.mxu0 %v192
    %583 = vmatpush.msra.mxu0 %v190
    %584 = vmatpush.msra.mxu0 %v188
    %585 = vmatpush.msra.mxu0 %v186
    %586 = vmatpush.msra.mxu0 %v184
    %587 = vmatpush.msra.mxu0 %v182
    %588 = vmatpush.msra.mxu0 %v180
    %589 = vmatpush.msra.mxu0 %v178
    %590 = vmatpush.msra.mxu0 %v176
    %591 = vmatpush.msra.mxu0 %v174
    %592 = vmatmul.f32.gmra.mxu0 %v570
    %v593 = vpop.f32.mrf.mxu0
    %v594 = vadd.f32 0.0, %v593
    %595 = vdwg.mxu0
    %596 = vmatpush.msra.mxu0 %v205
    %597 = vmatpush.msra.mxu0 %v203
    %598 = vmatpush.msra.mxu0 %v201
    %599 = vmatpush.msra.mxu0 %v199
    %600 = vmatpush.msra.mxu0 %v197
    %601 = vmatpush.msra.mxu0 %v195
    %602 = vmatpush.msra.mxu0 %v193
    %603 = vmatpush.msra.mxu0 %v191
    %604 = vmatpush.msra.mxu0 %v189
    %605 = vmatpush.msra.mxu0 %v187
    %606 = vmatpush.msra.mxu0 %v185
    %607 = vmatpush.msra.mxu0 %v183
    %608 = vmatpush.msra.mxu0 %v181
    %609 = vmatpush.msra.mxu0 %v179
    %610 = vmatpush.msra.mxu0 %v177
    %611 = vmatpush.msra.mxu0 %v175
    %612 = vmatmul.f32.gmra.mxu0 %v570
    %v613 = vpop.f32.mrf.mxu0
    %v614 = vadd.f32 0.0, %v613
    %615 = vdwg.mxu0
    %v616 = vadd.f32 %v574, %v594
    %v617 = vxor.u32 %v616, 2147483648
    %v618 = vmul.f32 %v617, 1.442695
    %v619 = vpow.pop %v618
    %v620 = vadd.f32 %v619, 1.0
    %v621 = vrcp.pop %v620
    %v622 = vmul.f32 %v620, %v621
    %v623 = vsub.f32 1.0, %v622
    %v624 = vmul.f32 %v621, %v623
    %v625 = vadd.f32 %v621, %v624
    %vm626 = vweird.f32 %v620
    %vm627 = vweird.f32 %v621
    %vm628 = vmor %vm626, %vm627
    %v629 = vsel %vm628, %v621, %v625
    %v630 = vand.u32 2147483647, %v620
    %vm631 = vcmp.eq.f32.partialorder %v630, 8.507059e+37
    %v632 = vand.u32 %v620, 2147483648
    %v633 = vor.u32 1.1754944e-38, %v632
    %v634 = vsel %vm631, %v633, %v629
    %v635 = vmul.f32 1.0, %v634
    %v636 = vadd.f32 %v614, %v168
    %v637 = vmul.f32 %v635, %v636
    %v638 = vadd.f32 %v575, %v637
    %v639 = vtanh.pop %v638
    %640 = vrot.lane.b32.xlu0 %v635, 64
    %v641 = vpop.permute.xlu0 %640
    %v642 = vsub.f32 %v570, %v639
    %v643 = vmul.f32 %v641, %v642
    %v644 = vadd.f32 %v639, %v643
    %s645 = smul.u32 6, 2
    %s646 = smul.addr %s645, 8
    %s647 = scalar_lea.vmem [#allocation2], %s646
    %v648 = vld [vmem:[%s647] sm:$0xff]
    %v649 = vld [vmem:[%s647 + $0x8] sm:$0xff]
    %650 = vmatpush.msra.mxu0 %v204
    %651 = vmatpush.msra.mxu0 %v202
    %652 = vmatpush.msra.mxu0 %v200
    %653 = vmatpush.msra.mxu0 %v198
    %654 = vmatpush.msra.mxu0 %v196
    %655 = vmatpush.msra.mxu0 %v194
    %656 = vmatpush.msra.mxu0 %v192
    %657 = vmatpush.msra.mxu0 %v190
    %658 = vmatpush.msra.mxu0 %v188
    %659 = vmatpush.msra.mxu0 %v186
    %660 = vmatpush.msra.mxu0 %v184
    %661 = vmatpush.msra.mxu0 %v182
    %662 = vmatpush.msra.mxu0 %v180
    %663 = vmatpush.msra.mxu0 %v178
    %664 = vmatpush.msra.mxu0 %v176
    %665 = vmatpush.msra.mxu0 %v174
    %666 = vmatmul.f32.gmra.mxu0 %v644
    %v667 = vpop.f32.mrf.mxu0
    %v668 = vadd.f32 0.0, %v667
    %669 = vdwg.mxu0
    %670 = vmatpush.msra.mxu0 %v205
    %671 = vmatpush.msra.mxu0 %v203
    %672 = vmatpush.msra.mxu0 %v201
    %673 = vmatpush.msra.mxu0 %v199
    %674 = vmatpush.msra.mxu0 %v197
    %675 = vmatpush.msra.mxu0 %v195
    %676 = vmatpush.msra.mxu0 %v193
    %677 = vmatpush.msra.mxu0 %v191
    %678 = vmatpush.msra.mxu0 %v189
    %679 = vmatpush.msra.mxu0 %v187
    %680 = vmatpush.msra.mxu0 %v185
    %681 = vmatpush.msra.mxu0 %v183
    %682 = vmatpush.msra.mxu0 %v181
    %683 = vmatpush.msra.mxu0 %v179
    %684 = vmatpush.msra.mxu0 %v177
    %685 = vmatpush.msra.mxu0 %v175
    %686 = vmatmul.f32.gmra.mxu0 %v644
    %v687 = vpop.f32.mrf.mxu0
    %v688 = vadd.f32 0.0, %v687
    %689 = vdwg.mxu0
    %v690 = vadd.f32 %v648, %v668
    %v691 = vxor.u32 %v690, 2147483648
    %v692 = vmul.f32 %v691, 1.442695
    %v693 = vpow.pop %v692
    %v694 = vadd.f32 %v693, 1.0
    %v695 = vrcp.pop %v694
    %v696 = vmul.f32 %v694, %v695
    %v697 = vsub.f32 1.0, %v696
    %v698 = vmul.f32 %v695, %v697
    %v699 = vadd.f32 %v695, %v698
    %vm700 = vweird.f32 %v694
    %vm701 = vweird.f32 %v695
    %vm702 = vmor %vm700, %vm701
    %v703 = vsel %vm702, %v695, %v699
    %v704 = vand.u32 2147483647, %v694
    %vm705 = vcmp.eq.f32.partialorder %v704, 8.507059e+37
    %v706 = vand.u32 %v694, 2147483648
    %v707 = vor.u32 1.1754944e-38, %v706
    %v708 = vsel %vm705, %v707, %v703
    %v709 = vmul.f32 1.0, %v708
    %v710 = vadd.f32 %v688, %v168
    %v711 = vmul.f32 %v709, %v710
    %v712 = vadd.f32 %v649, %v711
    %v713 = vtanh.pop %v712
    %714 = vrot.lane.b32.xlu0 %v709, 64
    %v715 = vpop.permute.xlu0 %714
    %v716 = vsub.f32 %v644, %v713
    %v717 = vmul.f32 %v715, %v716
    %v718 = vadd.f32 %v713, %v717
    %s719 = smul.u32 7, 2
    %s720 = smul.addr %s719, 8
    %s721 = scalar_lea.vmem [#allocation2], %s720
    %v722 = vld [vmem:[%s721] sm:$0xff]
    %v723 = vld [vmem:[%s721 + $0x8] sm:$0xff]
    %724 = vmatpush.msra.mxu0 %v204
    %725 = vmatpush.msra.mxu0 %v202
    %726 = vmatpush.msra.mxu0 %v200
    %727 = vmatpush.msra.mxu0 %v198
    %728 = vmatpush.msra.mxu0 %v196
    %729 = vmatpush.msra.mxu0 %v194
    %730 = vmatpush.msra.mxu0 %v192
    %731 = vmatpush.msra.mxu0 %v190
    %732 = vmatpush.msra.mxu0 %v188
    %733 = vmatpush.msra.mxu0 %v186
    %734 = vmatpush.msra.mxu0 %v184
    %735 = vmatpush.msra.mxu0 %v182
    %736 = vmatpush.msra.mxu0 %v180
    %737 = vmatpush.msra.mxu0 %v178
    %738 = vmatpush.msra.mxu0 %v176
    %739 = vmatpush.msra.mxu0 %v174
    %740 = vmatmul.f32.gmra.mxu0 %v718
    %v741 = vpop.f32.mrf.mxu0
    %v742 = vadd.f32 0.0, %v741
    %743 = vdwg.mxu0
    %744 = vmatpush.msra.mxu0 %v205
    %745 = vmatpush.msra.mxu0 %v203
    %746 = vmatpush.msra.mxu0 %v201
    %747 = vmatpush.msra.mxu0 %v199
    %748 = vmatpush.msra.mxu0 %v197
    %749 = vmatpush.msra.mxu0 %v195
    %750 = vmatpush.msra.mxu0 %v193
    %751 = vmatpush.msra.mxu0 %v191
    %752 = vmatpush.msra.mxu0 %v189
    %753 = vmatpush.msra.mxu0 %v187
    %754 = vmatpush.msra.mxu0 %v185
    %755 = vmatpush.msra.mxu0 %v183
    %756 = vmatpush.msra.mxu0 %v181
    %757 = vmatpush.msra.mxu0 %v179
    %758 = vmatpush.msra.mxu0 %v177
    %759 = vmatpush.msra.mxu0 %v175
    %760 = vmatmul.f32.gmra.mxu0 %v718
    %v761 = vpop.f32.mrf.mxu0
    %v762 = vadd.f32 0.0, %v761
    %763 = vdwg.mxu0
    %v764 = vadd.f32 %v722, %v742
    %v765 = vxor.u32 %v764, 2147483648
    %v766 = vmul.f32 %v765, 1.442695
    %v767 = vpow.pop %v766
    %v768 = vadd.f32 %v767, 1.0
    %v769 = vrcp.pop %v768
    %v770 = vmul.f32 %v768, %v769
    %v771 = vsub.f32 1.0, %v770
    %v772 = vmul.f32 %v769, %v771
    %v773 = vadd.f32 %v769, %v772
    %vm774 = vweird.f32 %v768
    %vm775 = vweird.f32 %v769
    %vm776 = vmor %vm774, %vm775
    %v777 = vsel %vm776, %v769, %v773
    %v778 = vand.u32 2147483647, %v768
    %vm779 = vcmp.eq.f32.partialorder %v778, 8.507059e+37
    %v780 = vand.u32 %v768, 2147483648
    %v781 = vor.u32 1.1754944e-38, %v780
    %v782 = vsel %vm779, %v781, %v777
    %v783 = vmul.f32 1.0, %v782
    %v784 = vadd.f32 %v762, %v168
    %v785 = vmul.f32 %v783, %v784
    %v786 = vadd.f32 %v723, %v785
    %v787 = vtanh.pop %v786
    %788 = vrot.lane.b32.xlu0 %v783, 64
    %v789 = vpop.permute.xlu0 %788
    %v790 = vsub.f32 %v718, %v787
    %v791 = vmul.f32 %v789, %v790
    %v792 = vadd.f32 %v787, %v791
    %v793 = vld [vmem:[#allocation3 + $0x110] sm:$0xff]
    %v794 = vld [vmem:[#allocation3 + $0x120] sm:$0xff]
    %v795 = vld [vmem:[#allocation3 + $0x130] sm:$0xff]
    %v796 = vld [vmem:[#allocation3 + $0x140] sm:$0xff]
    %v797 = vld [vmem:[#allocation3 + $0x150] sm:$0xff]
    %v798 = vld [vmem:[#allocation3 + $0x160] sm:$0xff]
    %v799 = vld [vmem:[#allocation3 + $0x170] sm:$0xff]
    %v800 = vld [vmem:[#allocation3 + $0x180] sm:$0xff]
    %v801 = vld [vmem:[#allocation3 + $0x190] sm:$0xff]
    %v802 = vld [vmem:[#allocation3 + $0x1a0] sm:$0xff]
    %v803 = vld [vmem:[#allocation3 + $0x1b0] sm:$0xff]
    %v804 = vld [vmem:[#allocation3 + $0x1c0] sm:$0xff]
    %v805 = vld [vmem:[#allocation3 + $0x1d0] sm:$0xff]
    %v806 = vld [vmem:[#allocation3 + $0x1e0] sm:$0xff]
    %v807 = vld [vmem:[#allocation3 + $0x1f0] sm:$0xff]
    %v808 = vld [vmem:[#allocation3 + $0x200] sm:$0xff]
    %v809 = vld [vmem:[#allocation3 + $0x212] ss:$0 sm:$0xff]
    %810 = vmatpush.msra.mxu0 %v808
    %811 = vmatpush.msra.mxu0 %v807
    %812 = vmatpush.msra.mxu0 %v806
    %813 = vmatpush.msra.mxu0 %v805
    %814 = vmatpush.msra.mxu0 %v804
    %815 = vmatpush.msra.mxu0 %v803
    %816 = vmatpush.msra.mxu0 %v802
    %817 = vmatpush.msra.mxu0 %v801
    %818 = vmatpush.msra.mxu0 %v800
    %819 = vmatpush.msra.mxu0 %v799
    %820 = vmatpush.msra.mxu0 %v798
    %821 = vmatpush.msra.mxu0 %v797
    %822 = vmatpush.msra.mxu0 %v796
    %823 = vmatpush.msra.mxu0 %v795
    %824 = vmatpush.msra.mxu0 %v794
    %825 = vmatpush.msra.mxu0 %v793
    %826 = vmatmul.f32.gmra.mxu0 %v792
    %v827 = vpop.f32.mrf.mxu0
    %v828 = vadd.f32 %v809, %v827
    %829 = vdwg.mxu0
    %830 = vst [vmem:[#allocation6] sm:$0xff] %v828
    // Predicated region
    $region14: #{tpu_custom_call.1} parent=1 // pred_check
      _
    $region15: #{tpu_custom_call.1} parent=1 // pred_check_branch
      %832 = sbr.rel (0) target = $region17
    $region16: #{tpu_custom_call.1} parent=1 // pred_region
      %834 = vsyncadd [#allocation5], 0
      %s836 = sshll.u32 [#allocation6], 4
      %s837 = int_to_ptr.vmem [resolvable:$true] %s836
      %s838 = sshll.u32 %s2, 4
      %s839 = int_to_ptr.hbm [resolvable:$true] %s838
      %841 = dma.vmem_to_hbm [thread:$0]  %s837, 128, %s839, [#allocation5]
    $region17: #{tpu_custom_call.1} parent=1 // pred_fallthru
      _
    // Predicated region
    $region18: #{tpu_custom_call.1} parent=1 // pred_check
      _
    $region19: #{tpu_custom_call.1} parent=1 // pred_check_branch
      %843 = sbr.rel (0) target = $region21
    $region20: #{tpu_custom_call.1} parent=1 // pred_region
      %845 = dma.done [#allocation5], 128
    $region21: #{tpu_custom_call.1} parent=1 // pred_fallthru
      _
    %846 = vsyncpa [#allocation4], 1
    %847 = vsyncpa [#allocation5], 1

</llo_original>
